<compile_context>
chip_gen: v5e
topology: v5e:2x2
jax: 0.10.0
libtpu: 0.0.40
codegen_flags: <defaults>
</compile_context>

<pallas_src>
import math

import jax
import jax.numpy as jnp
from jax.experimental import pallas as pl
from jax.experimental.pallas import tpu as pltpu

_LOG_EPS = math.log(1e-8)  # value the reference assigns to exactly-zero pi


def _actor_kernel(xT_ref, w1_ref, b1_ref, w2_ref, b2_ref, w3_ref, b3_ref, gT_ref,
                  act_ref, logpT_ref, piT_ref):
    xT = xT_ref[...]                                            # [feat, tile_b]

    # TODO(synk): cast activations/weights to bf16 for the MXU (keep f32
    # accumulation) if hidden_dim is ever scaled toward MXU-native sizes.
    h1 = jnp.tanh(
        jnp.dot(w1_ref[...], xT, preferred_element_type=jnp.float32) + b1_ref[...])
    h2 = jnp.tanh(
        jnp.dot(w2_ref[...], h1, preferred_element_type=jnp.float32) + b2_ref[...])
    logits = (jnp.dot(w3_ref[...], h2, preferred_element_type=jnp.float32)
              + b3_ref[...])                                    # [A, tile_b]

    # Numerically stable log-softmax over the action (sublane) axis.
    m = jnp.max(logits, axis=0, keepdims=True)                  # [1, tile_b]
    shifted = logits - m
    s = jnp.sum(jnp.exp(shifted), axis=0, keepdims=True)
    log_pi = shifted - jnp.log(s)
    pi = jnp.exp(log_pi)

    # Reference semantics: z = (pi == 0) * 1e-8 ; log_probs = log(pi + z).
    logp = jnp.where(pi == 0.0, jnp.float32(_LOG_EPS), log_pi)

    # Categorical(pi).sample() via Gumbel-max on the log-softmax (equivalent
    # distribution); Gumbel noise is a kernel input (drawn in the wrapper).
    scores = log_pi + gT_ref[...]
    smax = jnp.max(scores, axis=0, keepdims=True)
    n_act = scores.shape[0]
    row = jax.lax.broadcasted_iota(jnp.int32, scores.shape, dimension=0)
    action = jnp.min(jnp.where(scores == smax, row, jnp.int32(n_act)),
                     axis=0, keepdims=True)

    act_ref[...] = action.astype(jnp.int32)                     # [1, tile_b]
    logpT_ref[...] = logp                                       # [A, tile_b]
    piT_ref[...] = pi                                           # [A, tile_b]


def _round_up(x, m):
    return ((x + m - 1) // m) * m


def sac_discrete_actor_forward(obs, params, key, *, tile_b=None):
    """obs: [B, input_len] f32; params in PyTorch layout (W [out,in], b [out]).

    Returns (action_index [B] i32, action_log_probs [B, A] f32, pi [B, A] f32).
    """
    w1, b1, w2, b2, w3, b3 = params
    B, feat = obs.shape
    hidden = w1.shape[0]
    A = w3.shape[0]

    if tile_b is None:
        if B < 256:
            tile_b = _round_up(max(B, 8), 128)        # single grid step
        else:
            tile_b = _round_up(-(-B // 2), 128)       # 2 even tiles (v7x megacore)
    num_tiles = pl.cdiv(B, tile_b)
    Bp = num_tiles * tile_b

    # Batch-on-lanes layout: transpose once in the wrapper, pad to the grid.
    xT = jnp.pad(obs.T, ((0, 0), (0, Bp - B)))                  # [feat, Bp]
    gT = jax.random.gumbel(key, (A, Bp), jnp.float32)           # [A, Bp]
    b1c = b1.reshape(hidden, 1)
    b2c = b2.reshape(hidden, 1)
    b3c = b3.reshape(A, 1)

    rep = lambda a: pl.BlockSpec(a.shape, lambda i: (0,) * a.ndim)
    bat = lambda rows: pl.BlockSpec((rows, tile_b), lambda i: (0, i))

    out_shapes = (
        jax.ShapeDtypeStruct((1, Bp), jnp.int32),
        jax.ShapeDtypeStruct((A, Bp), jnp.float32),
        jax.ShapeDtypeStruct((A, Bp), jnp.float32),
    )

    flops = 2 * Bp * (feat * hidden + hidden * hidden + hidden * A) + 12 * Bp * A
    transcendentals = Bp * (2 * hidden + 3 * A)
    bytes_accessed = 4 * (feat * Bp + A * Bp                       # obs^T, gumbel
                          + hidden * (feat + hidden + 2) + A * (hidden + 1)
                          + Bp * (1 + 2 * A))                      # outputs

    action, logpT, piT = pl.pallas_call(
        _actor_kernel,
        out_shape=out_shapes,
        grid_spec=pltpu.PrefetchScalarGridSpec(
            num_scalar_prefetch=0,
            grid=(num_tiles,),
            in_specs=[
                bat(feat),
                rep(w1), rep(b1c),
                rep(w2), rep(b2c),
                rep(w3), rep(b3c),
                bat(A),
            ],
            out_specs=(bat(1), bat(A), bat(A)),
        ),
        compiler_params=pltpu.CompilerParams(
            dimension_semantics=("parallel",),   # shard batch tiles across TCs
        ),
        cost_estimate=pl.CostEstimate(
            flops=flops,
            transcendentals=transcendentals,
            bytes_accessed=bytes_accessed),
    )(xT, w1, b1c, w2, b2c, w3, b3c, gT)

    return action[0, :B], logpT[:, :B].T, piT[:, :B].T


def make_params(key, input_len, hidden_dim, n_action):
    """Deterministic synthetic parameters in PyTorch layout (W [out,in], b [out])."""
    k1, k2, k3, k4, k5, k6 = jax.random.split(key, 6)
    scale = 0.5
    w1 = scale * jax.random.normal(k1, (hidden_dim, input_len), jnp.float32)
    b1 = 0.01 * jax.random.normal(k2, (hidden_dim,), jnp.float32)
    w2 = scale * jax.random.normal(k3, (hidden_dim, hidden_dim), jnp.float32)
    b2 = 0.01 * jax.random.normal(k4, (hidden_dim,), jnp.float32)
    w3 = scale * jax.random.normal(k5, (n_action, hidden_dim), jnp.float32)
    b3 = 0.01 * jax.random.normal(k6, (n_action,), jnp.float32)
    return (w1, b1, w2, b2, w3, b3)


def reference_forward(obs, params):
    """Pure-JAX reference of the PyTorch module's deterministic outputs."""
    w1, b1, w2, b2, w3, b3 = params
    h1 = jnp.tanh(obs @ w1.T + b1)
    h2 = jnp.tanh(h1 @ w2.T + b2)
    logits = h2 @ w3.T + b3
    pi = jax.nn.softmax(logits, axis=-1)
    z = (pi == 0.0).astype(jnp.float32) * 1e-8
    logp = jnp.log(pi + z)
    return logp, pi


if __name__ == "__main__":
    # Module-implied feature shapes (obs=16, hidden=32, n_action=8); batch sized
    # so the kernel exercises the 2-tile batch grid (2 x 256 rows).
    B, INPUT_LEN, HIDDEN, N_ACTION = 512, 16, 32, 8

    root = jax.random.PRNGKey(0)
    k_obs, k_params, k_sample = jax.random.split(root, 3)

    obs = jax.random.normal(k_obs, (B, INPUT_LEN), jnp.float32)
    params = make_params(k_params, INPUT_LEN, HIDDEN, N_ACTION)

    action_index, action_log_probs, pi = sac_discrete_actor_forward(
        obs, params, k_sample)
    jax.block_until_ready((action_index, action_log_probs, pi))

    # Internal consistency (tight): shapes, action range, pi rows sum to 1,
    # log_probs match the reference formula log(pi + (pi == 0) * 1e-8).
    assert action_index.shape == (B,)
    assert pi.shape == (B, N_ACTION) and action_log_probs.shape == (B, N_ACTION)
    assert bool(jnp.all((action_index >= 0) & (action_index < N_ACTION)))
    assert jnp.allclose(jnp.sum(pi, axis=-1), 1.0, atol=1e-5)
    assert jnp.allclose(action_log_probs, jnp.log(pi + (pi == 0.0) * 1e-8),
                        atol=1e-5)

    # Cross-check vs. pure-JAX reference (loose tolerance: Mosaic vs. XLA f32
    # matmul passes may differ in precision regime; catches layout/transpose bugs).
    ref_logp, ref_pi = reference_forward(obs, params)
    assert jnp.allclose(pi, ref_pi, atol=3e-2)
    assert jnp.allclose(action_log_probs, ref_logp, atol=3e-2)

    print("KERNEL_OK")
</pallas_src>

<mosaic_0001>
module attributes {stable_mosaic.version = 11 : i64} {
  func.func @_actor_kernel(%arg0: i32, %arg1: memref<16x256xf32, #tpu.memory_space<vmem>>, %arg2: memref<32x16xf32, #tpu.memory_space<vmem>>, %arg3: memref<32x1xf32, #tpu.memory_space<vmem>>, %arg4: memref<32x32xf32, #tpu.memory_space<vmem>>, %arg5: memref<32x1xf32, #tpu.memory_space<vmem>>, %arg6: memref<8x32xf32, #tpu.memory_space<vmem>>, %arg7: memref<8x1xf32, #tpu.memory_space<vmem>>, %arg8: memref<8x256xf32, #tpu.memory_space<vmem>>, %arg9: memref<1x256xi32, #tpu.memory_space<vmem>>, %arg10: memref<8x256xf32, #tpu.memory_space<vmem>>, %arg11: memref<8x256xf32, #tpu.memory_space<vmem>>) attributes {dimension_semantics = [#tpu.dimension_semantics<parallel>], iteration_bounds = array<i64: 2>, scalar_prefetch = 0 : i64, scratch_operands = 0 : i64, tpu.core_type = #tpu.core_type<tc>, window_params = [{transform_indices = @transform_0, window_bounds = array<i64: 16, 256>}, {pipeline_mode = #tpu.pipeline_mode<synchronous>, transform_indices = @transform_1, window_bounds = array<i64: 32, 16>}, {pipeline_mode = #tpu.pipeline_mode<synchronous>, transform_indices = @transform_2, window_bounds = array<i64: 32, 1>}, {pipeline_mode = #tpu.pipeline_mode<synchronous>, transform_indices = @transform_3, window_bounds = array<i64: 32, 32>}, {pipeline_mode = #tpu.pipeline_mode<synchronous>, transform_indices = @transform_4, window_bounds = array<i64: 32, 1>}, {pipeline_mode = #tpu.pipeline_mode<synchronous>, transform_indices = @transform_5, window_bounds = array<i64: 8, 32>}, {pipeline_mode = #tpu.pipeline_mode<synchronous>, transform_indices = @transform_6, window_bounds = array<i64: 8, 1>}, {transform_indices = @transform_7, window_bounds = array<i64: 8, 256>}, {transform_indices = @transform_8, window_bounds = array<i64: 1, 256>}, {transform_indices = @transform_9, window_bounds = array<i64: 8, 256>}, {transform_indices = @transform_10, window_bounds = array<i64: 8, 256>}]} {
    %c0 = arith.constant 0 : index
    %c0_0 = arith.constant 0 : index
    %0 = vector.load %arg1[%c0, %c0_0] : memref<16x256xf32, #tpu.memory_space<vmem>>, vector<16x256xf32>
    %c0_1 = arith.constant 0 : index
    %c0_2 = arith.constant 0 : index
    %1 = vector.load %arg2[%c0_1, %c0_2] : memref<32x16xf32, #tpu.memory_space<vmem>>, vector<32x16xf32>
    %cst = arith.constant dense<0.000000e+00> : vector<32x256xf32>
    %2 = tpu.matmul %1, %0, %cst {dimension_numbers = #tpu.dot_dimension_numbers<[1], [0], [0], [1], [0, 0, 1, 1], [], []>} : vector<32x16xf32>, vector<16x256xf32>, vector<32x256xf32> -> vector<32x256xf32>
    %c0_3 = arith.constant 0 : index
    %c0_4 = arith.constant 0 : index
    %3 = vector.load %arg3[%c0_3, %c0_4] : memref<32x1xf32, #tpu.memory_space<vmem>>, vector<32x1xf32>
    %4 = vector.broadcast %3 : vector<32x1xf32> to vector<32x256xf32>
    %5 = arith.addf %2, %4 : vector<32x256xf32>
    %6 = math.tanh %5 : vector<32x256xf32>
    %c0_5 = arith.constant 0 : index
    %c0_6 = arith.constant 0 : index
    %7 = vector.load %arg4[%c0_5, %c0_6] : memref<32x32xf32, #tpu.memory_space<vmem>>, vector<32x32xf32>
    %cst_7 = arith.constant dense<0.000000e+00> : vector<32x256xf32>
    %8 = tpu.matmul %7, %6, %cst_7 {dimension_numbers = #tpu.dot_dimension_numbers<[1], [0], [0], [1], [0, 0, 1, 1], [], []>} : vector<32x32xf32>, vector<32x256xf32>, vector<32x256xf32> -> vector<32x256xf32>
    %c0_8 = arith.constant 0 : index
    %c0_9 = arith.constant 0 : index
    %9 = vector.load %arg5[%c0_8, %c0_9] : memref<32x1xf32, #tpu.memory_space<vmem>>, vector<32x1xf32>
    %10 = vector.broadcast %9 : vector<32x1xf32> to vector<32x256xf32>
    %11 = arith.addf %8, %10 : vector<32x256xf32>
    %12 = math.tanh %11 : vector<32x256xf32>
    %c0_10 = arith.constant 0 : index
    %c0_11 = arith.constant 0 : index
    %13 = vector.load %arg6[%c0_10, %c0_11] : memref<8x32xf32, #tpu.memory_space<vmem>>, vector<8x32xf32>
    %cst_12 = arith.constant dense<0.000000e+00> : vector<8x256xf32>
    %14 = tpu.matmul %13, %12, %cst_12 {dimension_numbers = #tpu.dot_dimension_numbers<[1], [0], [0], [1], [0, 0, 1, 1], [], []>} : vector<8x32xf32>, vector<32x256xf32>, vector<8x256xf32> -> vector<8x256xf32>
    %c0_13 = arith.constant 0 : index
    %c0_14 = arith.constant 0 : index
    %15 = vector.load %arg7[%c0_13, %c0_14] : memref<8x1xf32, #tpu.memory_space<vmem>>, vector<8x1xf32>
    %16 = vector.broadcast %15 : vector<8x1xf32> to vector<8x256xf32>
    %17 = arith.addf %14, %16 : vector<8x256xf32>
    %cst_15 = arith.constant dense<0xFF800000> : vector<256xf32>
    %18 = vector.multi_reduction <maximumf>, %17, %cst_15 [0] : vector<8x256xf32> to vector<256xf32>
    %19 = vector.shape_cast %18 : vector<256xf32> to vector<1x256xf32>
    %20 = vector.broadcast %19 : vector<1x256xf32> to vector<8x256xf32>
    %21 = arith.subf %17, %20 : vector<8x256xf32>
    %22 = math.exp %21 : vector<8x256xf32>
    %cst_16 = arith.constant dense<0.000000e+00> : vector<256xf32>
    %23 = vector.multi_reduction <add>, %22, %cst_16 [0] : vector<8x256xf32> to vector<256xf32>
    %24 = vector.shape_cast %23 : vector<256xf32> to vector<1x256xf32>
    %25 = math.log %24 : vector<1x256xf32>
    %26 = vector.broadcast %25 : vector<1x256xf32> to vector<8x256xf32>
    %27 = arith.subf %21, %26 : vector<8x256xf32>
    %28 = math.exp %27 : vector<8x256xf32>
    %cst_17 = arith.constant 0.000000e+00 : f32
    %29 = vector.broadcast %cst_17 : f32 to vector<8x256xf32>
    %30 = arith.cmpf oeq, %28, %29 : vector<8x256xf32>
    %cst_18 = arith.constant -18.420681 : f32
    %31 = vector.broadcast %cst_18 : f32 to vector<8x256xf32>
    %32 = arith.select %30, %31, %27 : vector<8x256xi1>, vector<8x256xf32>
    %c0_19 = arith.constant 0 : index
    %c0_20 = arith.constant 0 : index
    %33 = vector.load %arg8[%c0_19, %c0_20] : memref<8x256xf32, #tpu.memory_space<vmem>>, vector<8x256xf32>
    %34 = arith.addf %27, %33 : vector<8x256xf32>
    %cst_21 = arith.constant dense<0xFF800000> : vector<256xf32>
    %35 = vector.multi_reduction <maximumf>, %34, %cst_21 [0] : vector<8x256xf32> to vector<256xf32>
    %36 = vector.shape_cast %35 : vector<256xf32> to vector<1x256xf32>
    %37 = tpu.iota {dimensions = array<i32: 0>} : vector<8x256xi32>
    %38 = vector.broadcast %36 : vector<1x256xf32> to vector<8x256xf32>
    %39 = arith.cmpf oeq, %34, %38 : vector<8x256xf32>
    %c8_i32 = arith.constant 8 : i32
    %40 = vector.broadcast %c8_i32 : i32 to vector<8x256xi32>
    %41 = arith.select %39, %37, %40 : vector<8x256xi1>, vector<8x256xi32>
    %cst_22 = arith.constant dense<2147483647> : vector<256xi32>
    %42 = vector.multi_reduction <minsi>, %41, %cst_22 [0] : vector<8x256xi32> to vector<256xi32>
    %43 = vector.shape_cast %42 : vector<256xi32> to vector<1x256xi32>
    %c0_23 = arith.constant 0 : index
    %c0_24 = arith.constant 0 : index
    %44 = vector.load %arg9[%c0_23, %c0_24] : memref<1x256xi32, #tpu.memory_space<vmem>>, vector<1x256xi32>
    tpu.vector_store %arg9[%c0_23, %c0_24], %43 {strides = array<i32>} : memref<1x256xi32, #tpu.memory_space<vmem>>, vector<1x256xi32>,
    %c0_25 = arith.constant 0 : index
    %c0_26 = arith.constant 0 : index
    %45 = vector.load %arg10[%c0_25, %c0_26] : memref<8x256xf32, #tpu.memory_space<vmem>>, vector<8x256xf32>
    tpu.vector_store %arg10[%c0_25, %c0_26], %32 {strides = array<i32>} : memref<8x256xf32, #tpu.memory_space<vmem>>, vector<8x256xf32>,
    %c0_27 = arith.constant 0 : index
    %c0_28 = arith.constant 0 : index
    %46 = vector.load %arg11[%c0_27, %c0_28] : memref<8x256xf32, #tpu.memory_space<vmem>>, vector<8x256xf32>
    tpu.vector_store %arg11[%c0_27, %c0_28], %28 {strides = array<i32>} : memref<8x256xf32, #tpu.memory_space<vmem>>, vector<8x256xf32>,
    return
  }
  func.func @transform_0(%arg0: i32) -> (i32, i32) {
    %c0_i32 = arith.constant 0 : i32
    %c0_i32_0 = arith.constant 0 : i32
    return %c0_i32, %arg0 : i32, i32
  }
  func.func @transform_1(%arg0: i32) -> (i32, i32) {
    %c0_i32 = arith.constant 0 : i32
    %c0_i32_0 = arith.constant 0 : i32
    %c0_i32_1 = arith.constant 0 : i32
    return %c0_i32, %c0_i32_0 : i32, i32
  }
  func.func @transform_2(%arg0: i32) -> (i32, i32) {
    %c0_i32 = arith.constant 0 : i32
    %c0_i32_0 = arith.constant 0 : i32
    %c0_i32_1 = arith.constant 0 : i32
    return %c0_i32, %c0_i32_0 : i32, i32
  }
  func.func @transform_3(%arg0: i32) -> (i32, i32) {
    %c0_i32 = arith.constant 0 : i32
    %c0_i32_0 = arith.constant 0 : i32
    %c0_i32_1 = arith.constant 0 : i32
    return %c0_i32, %c0_i32_0 : i32, i32
  }
  func.func @transform_4(%arg0: i32) -> (i32, i32) {
    %c0_i32 = arith.constant 0 : i32
    %c0_i32_0 = arith.constant 0 : i32
    %c0_i32_1 = arith.constant 0 : i32
    return %c0_i32, %c0_i32_0 : i32, i32
  }
  func.func @transform_5(%arg0: i32) -> (i32, i32) {
    %c0_i32 = arith.constant 0 : i32
    %c0_i32_0 = arith.constant 0 : i32
    %c0_i32_1 = arith.constant 0 : i32
    return %c0_i32, %c0_i32_0 : i32, i32
  }
  func.func @transform_6(%arg0: i32) -> (i32, i32) {
    %c0_i32 = arith.constant 0 : i32
    %c0_i32_0 = arith.constant 0 : i32
    %c0_i32_1 = arith.constant 0 : i32
    return %c0_i32, %c0_i32_0 : i32, i32
  }
  func.func @transform_7(%arg0: i32) -> (i32, i32) {
    %c0_i32 = arith.constant 0 : i32
    %c0_i32_0 = arith.constant 0 : i32
    return %c0_i32, %arg0 : i32, i32
  }
  func.func @transform_8(%arg0: i32) -> (i32, i32) {
    %c0_i32 = arith.constant 0 : i32
    %c0_i32_0 = arith.constant 0 : i32
    return %c0_i32, %arg0 : i32, i32
  }
  func.func @transform_9(%arg0: i32) -> (i32, i32) {
    %c0_i32 = arith.constant 0 : i32
    %c0_i32_0 = arith.constant 0 : i32
    return %c0_i32, %arg0 : i32, i32
  }
  func.func @transform_10(%arg0: i32) -> (i32, i32) {
    %c0_i32 = arith.constant 0 : i32
    %c0_i32_0 = arith.constant 0 : i32
    return %c0_i32, %arg0 : i32, i32
  }
}

</mosaic_0001>

<llo_original>
// kernel: tpu_custom_call.1
$region0: #{tpu_custom_call.1}
  #allocation0 [shape = 'u32[]', space=smem, size = 0x4, offset = 0x4, fixed_abs, tag = 'smem constant byte address 0x4 - core index']
  #allocation1 [shape = 'u32[72,128]{1,0:T(1,128)}', space=vmem, size = 0x9000, scoped, tag = 'internal scratch']
  %s0 = inlined_call_operand.vmem [shape: f32[16,512], index: 0, kind: input, shape index: {}]
  %s1 = inlined_call_operand.vmem [shape: f32[32,16], index: 1, kind: input, shape index: {}]
  %s2 = inlined_call_operand.vmem [shape: f32[32,1], index: 2, kind: input, shape index: {}]
  %s3 = inlined_call_operand.vmem [shape: f32[32,32], index: 3, kind: input, shape index: {}]
  %s4 = inlined_call_operand.vmem [shape: f32[32,1], index: 4, kind: input, shape index: {}]
  %s5 = inlined_call_operand.hbm [shape: f32[8,32], index: 5, kind: input, shape index: {}]
  %s6 = inlined_call_operand.vmem [shape: f32[8,1], index: 6, kind: input, shape index: {}]
  %s7 = inlined_call_operand.vmem [shape: f32[8,512], index: 7, kind: input, shape index: {}]
  %s8 = inlined_call_operand.hbm [shape: s32[1,512], index: 8, kind: output, shape index: {0}]
  %s9 = inlined_call_operand.hbm [shape: f32[8,512], index: 9, kind: output, shape index: {1}]
  %s10 = inlined_call_operand.hbm [shape: f32[8,512], index: 10, kind: output, shape index: {2}]
  %11 = xla_tuple %s8, %s9, %s10
  %s12 = sld [smem:[#allocation0]]
  $region108: #{tpu_custom_call.1} parent=0
    _
  %s14 = ssub.s32 1, %s12
  %s15 = scalar_select 0, %s14, %s12
  $region1: #{tpu_custom_call.1} parent=0
    #allocation2 [shape = 'u8[32768]{0}', space=vmem, size = 0x8000, scoped, tag = 'input window, operand 0']
    #allocation3 [shape = 'u8[4096]{0}', space=vmem, size = 0x1000, scoped, tag = 'input window, operand 5, single buffered']
    #allocation4 [shape = 's32[2]{0}', space=sflag, size = 0x8, scoped, tag = 'scoped memory for tpu_custom_call.1']
    #allocation5 [shape = 's32[2]{0}', space=sflag, size = 0x8, scoped, tag = 'scoped memory for tpu_custom_call.1']
    #allocation6 [shape = 'u8[2048]{0}', space=vmem, size = 0x800, scoped, tag = 'output window, operand 0']
    #allocation7 [shape = 'u8[16384]{0}', space=vmem, size = 0x4000, scoped, tag = 'output window, operand 1']
    #allocation8 [shape = 's32[2]{0}', space=sflag, size = 0x8, scoped, tag = 'scoped memory for tpu_custom_call.1']
    #allocation9 [shape = 'u8[16384]{0}', space=vmem, size = 0x4000, scoped, tag = 'output window, operand 2']
    %16 = vsyncpa [#allocation4], 0
    %17 = vsyncpa [#allocation5], 0
    %s18 = scalar_lea.sflag [#allocation5], 1
    %19 = vsyncpa %s18, 0
    %20 = vsyncpa [#allocation8], 0
    %s21 = scalar_lea.sflag [#allocation8], 1
    %22 = vsyncpa %s21, 0
    loop: start=0, step=1, limit=4
    $region2: #{tpu_custom_call.1} parent=1 // loop_pre_header
      _
    $region3: #{tpu_custom_call.1} parent=1 // loop_header
      %s24 = sphi 0, %s28
      %p25 = scmp.ge.s32.totalorder %s24, 4
      %s34 = sphi 0, %s36
      %s37 = sphi 0, %s34
      %s38 = sphi 0, %s37
      %s54 = sphi 0, %s38
      %s58 = sphi 0, %s58
      %s60 = sphi 0, %s58
      %s61 = sphi 0, %s60
      %s75 = sphi 0, %s61
      %s79 = sphi 0, %s79
      %s81 = sphi 0, %s79
      %s82 = sphi 0, %s81
      %s96 = sphi 0, %s82
      %s100 = sphi 0, %s100
      %s102 = sphi 0, %s100
      %s103 = sphi 0, %s102
      %s117 = sphi 0, %s103
      %s121 = sphi 0, %s121
      %s123 = sphi 0, %s121
      %s124 = sphi 0, %s123
      %s138 = sphi 0, %s124
      %s142 = sphi 0, %s142
      %s144 = sphi 0, %s142
      %s145 = sphi 0, %s144
      %s159 = sphi 0, %s145
      %s163 = sphi 0, %s163
      %s165 = sphi 0, %s163
      %s166 = sphi 0, %s165
      %s180 = sphi 0, %s166
      %s186 = sphi 0, %s188
      %s189 = sphi 0, %s186
      %s190 = sphi 0, %s189
      %s206 = sphi 0, %s190
      %s212 = sphi 0, %s214
      %s215 = sphi 0, %s212
      %s216 = sphi 0, %s215
      %s232 = sphi 0, %s216
      %s238 = sphi 0, %s240
      %s241 = sphi 0, %s238
      %s242 = sphi 0, %s241
      %s258 = sphi 0, %s242
      %s264 = sphi 0, %s266
      %s267 = sphi 0, %s264
      %s268 = sphi 0, %s267
      %s284 = sphi 0, %s268
    $region4: #{tpu_custom_call.1} parent=1 // loop_header_branch
      %27 = sbr.rel (%p25) target = $region8
    $region5: #{tpu_custom_call.1} parent=1 // loop_body
      %s29 = ssub.s32 %s24, 1
      %s30 = ssub.s32 %s24, 2
      %s31 = sadd.s32 %s24, 1
      %s32 = ssub.s32 %s24, %s31
      %p33 = scmp.eq.s32.totalorder %s32, 0
      %s35 = sadd.s32 %s34, 1
      %s36 = scalar_select %p33, %s34, %s35
      %p39 = pneg %p33
      %p40 = scmp.eq.s32.totalorder %s24, 1
      %p41 = por %p39, %p40
      %p42 = scmp.ne.s32.totalorder %s34, %s37
      %p43 = scmp.eq.s32.totalorder %s24, 0
      %p44 = por %p42, %p43
      %p45 = scmp.ne.s32.totalorder %s34, %s37
      %p46 = scmp.eq.s32.totalorder %s29, 1
      %p47 = por %p45, %p46
      %p48 = scmp.ne.s32.totalorder %s37, %s38
      %p49 = scmp.eq.s32.totalorder %s29, 0
      %p50 = por %p48, %p49
      %p51 = scmp.ne.s32.totalorder %s37, %s38
      %p52 = scmp.eq.s32.totalorder %s30, 1
      %p53 = por %p51, %p52
      %p55 = scmp.ne.s32.totalorder %s38, %s54
      %p56 = scmp.eq.s32.totalorder %s30, 0
      %p57 = por %p55, %p56
      %s59 = sadd.s32 %s58, 1
      %p62 = scmp.eq.s32.totalorder %s24, 1
      %p63 = scmp.ne.s32.totalorder %s58, %s60
      %p64 = scmp.eq.s32.totalorder %s24, 0
      %p65 = por %p63, %p64
      %p66 = scmp.ne.s32.totalorder %s58, %s60
      %p67 = scmp.eq.s32.totalorder %s29, 1
      %p68 = por %p66, %p67
      %p69 = scmp.ne.s32.totalorder %s60, %s61
      %p70 = scmp.eq.s32.totalorder %s29, 0
      %p71 = por %p69, %p70
      %p72 = scmp.ne.s32.totalorder %s60, %s61
      %p73 = scmp.eq.s32.totalorder %s30, 1
      %p74 = por %p72, %p73
      %p76 = scmp.ne.s32.totalorder %s61, %s75
      %p77 = scmp.eq.s32.totalorder %s30, 0
      %p78 = por %p76, %p77
      %s80 = sadd.s32 %s79, 1
      %p83 = scmp.eq.s32.totalorder %s24, 1
      %p84 = scmp.ne.s32.totalorder %s79, %s81
      %p85 = scmp.eq.s32.totalorder %s24, 0
      %p86 = por %p84, %p85
      %p87 = scmp.ne.s32.totalorder %s79, %s81
      %p88 = scmp.eq.s32.totalorder %s29, 1
      %p89 = por %p87, %p88
      %p90 = scmp.ne.s32.totalorder %s81, %s82
      %p91 = scmp.eq.s32.totalorder %s29, 0
      %p92 = por %p90, %p91
      %p93 = scmp.ne.s32.totalorder %s81, %s82
      %p94 = scmp.eq.s32.totalorder %s30, 1
      %p95 = por %p93, %p94
      %p97 = scmp.ne.s32.totalorder %s82, %s96
      %p98 = scmp.eq.s32.totalorder %s30, 0
      %p99 = por %p97, %p98
      %s101 = sadd.s32 %s100, 1
      %p104 = scmp.eq.s32.totalorder %s24, 1
      %p105 = scmp.ne.s32.totalorder %s100, %s102
      %p106 = scmp.eq.s32.totalorder %s24, 0
      %p107 = por %p105, %p106
      %p108 = scmp.ne.s32.totalorder %s100, %s102
      %p109 = scmp.eq.s32.totalorder %s29, 1
      %p110 = por %p108, %p109
      %p111 = scmp.ne.s32.totalorder %s102, %s103
      %p112 = scmp.eq.s32.totalorder %s29, 0
      %p113 = por %p111, %p112
      %p114 = scmp.ne.s32.totalorder %s102, %s103
      %p115 = scmp.eq.s32.totalorder %s30, 1
      %p116 = por %p114, %p115
      %p118 = scmp.ne.s32.totalorder %s103, %s117
      %p119 = scmp.eq.s32.totalorder %s30, 0
      %p120 = por %p118, %p119
      %s122 = sadd.s32 %s121, 1
      %p125 = scmp.eq.s32.totalorder %s24, 1
      %p126 = scmp.ne.s32.totalorder %s121, %s123
      %p127 = scmp.eq.s32.totalorder %s24, 0
      %p128 = por %p126, %p127
      %p129 = scmp.ne.s32.totalorder %s121, %s123
      %p130 = scmp.eq.s32.totalorder %s29, 1
      %p131 = por %p129, %p130
      %p132 = scmp.ne.s32.totalorder %s123, %s124
      %p133 = scmp.eq.s32.totalorder %s29, 0
      %p134 = por %p132, %p133
      %p135 = scmp.ne.s32.totalorder %s123, %s124
      %p136 = scmp.eq.s32.totalorder %s30, 1
      %p137 = por %p135, %p136
      %p139 = scmp.ne.s32.totalorder %s124, %s138
      %p140 = scmp.eq.s32.totalorder %s30, 0
      %p141 = por %p139, %p140
      %s143 = sadd.s32 %s142, 1
      %p146 = scmp.eq.s32.totalorder %s24, 1
      %p147 = scmp.ne.s32.totalorder %s142, %s144
      %p148 = scmp.eq.s32.totalorder %s24, 0
      %p149 = por %p147, %p148
      %p150 = scmp.ne.s32.totalorder %s142, %s144
      %p151 = scmp.eq.s32.totalorder %s29, 1
      %p152 = por %p150, %p151
      %p153 = scmp.ne.s32.totalorder %s144, %s145
      %p154 = scmp.eq.s32.totalorder %s29, 0
      %p155 = por %p153, %p154
      %p156 = scmp.ne.s32.totalorder %s144, %s145
      %p157 = scmp.eq.s32.totalorder %s30, 1
      %p158 = por %p156, %p157
      %p160 = scmp.ne.s32.totalorder %s145, %s159
      %p161 = scmp.eq.s32.totalorder %s30, 0
      %p162 = por %p160, %p161
      %s164 = sadd.s32 %s163, 1
      %p167 = scmp.eq.s32.totalorder %s24, 1
      %p168 = scmp.ne.s32.totalorder %s163, %s165
      %p169 = scmp.eq.s32.totalorder %s24, 0
      %p170 = por %p168, %p169
      %p171 = scmp.ne.s32.totalorder %s163, %s165
      %p172 = scmp.eq.s32.totalorder %s29, 1
      %p173 = por %p171, %p172
      %p174 = scmp.ne.s32.totalorder %s165, %s166
      %p175 = scmp.eq.s32.totalorder %s29, 0
      %p176 = por %p174, %p175
      %p177 = scmp.ne.s32.totalorder %s165, %s166
      %p178 = scmp.eq.s32.totalorder %s30, 1
      %p179 = por %p177, %p178
      %p181 = scmp.ne.s32.totalorder %s166, %s180
      %p182 = scmp.eq.s32.totalorder %s30, 0
      %p183 = por %p181, %p182
      %s184 = ssub.s32 %s24, %s31
      %p185 = scmp.eq.s32.totalorder %s184, 0
      %s187 = sadd.s32 %s186, 1
      %s188 = scalar_select %p185, %s186, %s187
      %p191 = pneg %p185
      %p192 = scmp.eq.s32.totalorder %s24, 1
      %p193 = por %p191, %p192
      %p194 = scmp.ne.s32.totalorder %s186, %s189
      %p195 = scmp.eq.s32.totalorder %s24, 0
      %p196 = por %p194, %p195
      %p197 = scmp.ne.s32.totalorder %s186, %s189
      %p198 = scmp.eq.s32.totalorder %s29, 1
      %p199 = por %p197, %p198
      %p200 = scmp.ne.s32.totalorder %s189, %s190
      %p201 = scmp.eq.s32.totalorder %s29, 0
      %p202 = por %p200, %p201
      %p203 = scmp.ne.s32.totalorder %s189, %s190
      %p204 = scmp.eq.s32.totalorder %s30, 1
      %p205 = por %p203, %p204
      %p207 = scmp.ne.s32.totalorder %s190, %s206
      %p208 = scmp.eq.s32.totalorder %s30, 0
      %p209 = por %p207, %p208
      %s210 = ssub.s32 %s24, %s31
      %p211 = scmp.eq.s32.totalorder %s210, 0
      %s213 = sadd.s32 %s212, 1
      %s214 = scalar_select %p211, %s212, %s213
      %p217 = pneg %p211
      %p218 = scmp.eq.s32.totalorder %s24, 1
      %p219 = por %p217, %p218
      %p220 = scmp.ne.s32.totalorder %s212, %s215
      %p221 = scmp.eq.s32.totalorder %s24, 0
      %p222 = por %p220, %p221
      %p223 = scmp.ne.s32.totalorder %s212, %s215
      %p224 = scmp.eq.s32.totalorder %s29, 1
      %p225 = por %p223, %p224
      %p226 = scmp.ne.s32.totalorder %s215, %s216
      %p227 = scmp.eq.s32.totalorder %s29, 0
      %p228 = por %p226, %p227
      %p229 = scmp.ne.s32.totalorder %s215, %s216
      %p230 = scmp.eq.s32.totalorder %s30, 1
      %p231 = por %p229, %p230
      %p233 = scmp.ne.s32.totalorder %s216, %s232
      %p234 = scmp.eq.s32.totalorder %s30, 0
      %p235 = por %p233, %p234
      %s236 = ssub.s32 %s24, %s31
      %p237 = scmp.eq.s32.totalorder %s236, 0
      %s239 = sadd.s32 %s238, 1
      %s240 = scalar_select %p237, %s238, %s239
      %p243 = pneg %p237
      %p244 = scmp.eq.s32.totalorder %s24, 1
      %p245 = por %p243, %p244
      %p246 = scmp.ne.s32.totalorder %s238, %s241
      %p247 = scmp.eq.s32.totalorder %s24, 0
      %p248 = por %p246, %p247
      %p249 = scmp.ne.s32.totalorder %s238, %s241
      %p250 = scmp.eq.s32.totalorder %s29, 1
      %p251 = por %p249, %p250
      %p252 = scmp.ne.s32.totalorder %s241, %s242
      %p253 = scmp.eq.s32.totalorder %s29, 0
      %p254 = por %p252, %p253
      %p255 = scmp.ne.s32.totalorder %s241, %s242
      %p256 = scmp.eq.s32.totalorder %s30, 1
      %p257 = por %p255, %p256
      %p259 = scmp.ne.s32.totalorder %s242, %s258
      %p260 = scmp.eq.s32.totalorder %s30, 0
      %p261 = por %p259, %p260
      %s262 = ssub.s32 %s24, %s31
      %p263 = scmp.eq.s32.totalorder %s262, 0
      %s265 = sadd.s32 %s264, 1
      %s266 = scalar_select %p263, %s264, %s265
      %p269 = pneg %p263
      %p270 = scmp.eq.s32.totalorder %s24, 1
      %p271 = por %p269, %p270
      %p272 = scmp.ne.s32.totalorder %s264, %s267
      %p273 = scmp.eq.s32.totalorder %s24, 0
      %p274 = por %p272, %p273
      %p275 = scmp.ne.s32.totalorder %s264, %s267
      %p276 = scmp.eq.s32.totalorder %s29, 1
      %p277 = por %p275, %p276
      %p278 = scmp.ne.s32.totalorder %s267, %s268
      %p279 = scmp.eq.s32.totalorder %s29, 0
      %p280 = por %p278, %p279
      %p281 = scmp.ne.s32.totalorder %s267, %s268
      %p282 = scmp.eq.s32.totalorder %s30, 1
      %p283 = por %p281, %p282
      %p285 = scmp.ne.s32.totalorder %s268, %s284
      %p286 = scmp.eq.s32.totalorder %s30, 0
      %p287 = por %p285, %p286
      %p288 = scmp.le.s32.totalorder 1, %s24
      %p289 = scmp.lt.s32.totalorder %s24, 3
      %p290 = pnand %p288, %p289
      %p291 = pneg %p290
      // Predicated region
      $region9: #{tpu_custom_call.1} parent=5 // pred_check
        _
      $region10: #{tpu_custom_call.1} parent=5 // pred_check_branch
        %293 = sbr.rel (%p290) target = $region12
      $region11: #{tpu_custom_call.1} parent=5 // pred_region
        %s294 = ssub.s32 %s24, 1
        // Predicated region
        $region13: #{tpu_custom_call.1} parent=11 // pred_check
          %p295 = pneg %p71
        $region14: #{tpu_custom_call.1} parent=11 // pred_check_branch
          %297 = sbr.rel (%p295) target = $region16
        $region15: #{tpu_custom_call.1} parent=11 // pred_region
          _
        $region16: #{tpu_custom_call.1} parent=11 // pred_fallthru
          _
        // Predicated region
        $region17: #{tpu_custom_call.1} parent=11 // pred_check
          %p298 = pneg %p92
        $region18: #{tpu_custom_call.1} parent=11 // pred_check_branch
          %300 = sbr.rel (%p298) target = $region20
        $region19: #{tpu_custom_call.1} parent=11 // pred_region
          _
        $region20: #{tpu_custom_call.1} parent=11 // pred_fallthru
          _
        // Predicated region
        $region21: #{tpu_custom_call.1} parent=11 // pred_check
          %p301 = pneg %p113
        $region22: #{tpu_custom_call.1} parent=11 // pred_check_branch
          %303 = sbr.rel (%p301) target = $region24
        $region23: #{tpu_custom_call.1} parent=11 // pred_region
          _
        $region24: #{tpu_custom_call.1} parent=11 // pred_fallthru
          _
        // Predicated region
        $region25: #{tpu_custom_call.1} parent=11 // pred_check
          %p304 = pneg %p134
        $region26: #{tpu_custom_call.1} parent=11 // pred_check_branch
          %306 = sbr.rel (%p304) target = $region28
        $region27: #{tpu_custom_call.1} parent=11 // pred_region
          _
        $region28: #{tpu_custom_call.1} parent=11 // pred_fallthru
          _
        // Predicated region
        $region29: #{tpu_custom_call.1} parent=11 // pred_check
          %p307 = pneg %p155
        $region30: #{tpu_custom_call.1} parent=11 // pred_check_branch
          %309 = sbr.rel (%p307) target = $region32
        $region31: #{tpu_custom_call.1} parent=11 // pred_region
          %311 = vsyncadd [#allocation4], 0
          %s313 = sshll.u32 %s5, 4
          %s314 = int_to_ptr.hbm [resolvable:$true] %s313
          %s315 = sshll.u32 [#allocation3], 4
          %s316 = int_to_ptr.vmem [resolvable:$true] %s315
          %318 = dma.hbm_to_vmem [thread:$0]  %s314, 128, %s316, [#allocation4]
        $region32: #{tpu_custom_call.1} parent=11 // pred_fallthru
          _
        // Predicated region
        $region33: #{tpu_custom_call.1} parent=11 // pred_check
          %p319 = pneg %p176
        $region34: #{tpu_custom_call.1} parent=11 // pred_check_branch
          %321 = sbr.rel (%p319) target = $region36
        $region35: #{tpu_custom_call.1} parent=11 // pred_region
          _
        $region36: #{tpu_custom_call.1} parent=11 // pred_fallthru
          _
      $region12: #{tpu_custom_call.1} parent=5 // pred_fallthru
        _
      %p322 = scmp.lt.s32.totalorder %s24, 2
      // Predicated region
      $region37: #{tpu_custom_call.1} parent=5 // pred_check
        %p323 = pneg %p322
      $region38: #{tpu_custom_call.1} parent=5 // pred_check_branch
        %325 = sbr.rel (%p323) target = $region40
      $region39: #{tpu_custom_call.1} parent=5 // pred_region
        // Predicated region
        $region41: #{tpu_custom_call.1} parent=39 // pred_check
          %p326 = pneg %p44
        $region42: #{tpu_custom_call.1} parent=39 // pred_check_branch
          %328 = sbr.rel (%p326) target = $region44
        $region43: #{tpu_custom_call.1} parent=39 // pred_region
          %s329 = sand.u32 %s34, 1
          %s330 = sand.u32 %s34, 1
          %s331 = smul.addr %s330, 32
          %s332 = scalar_lea.vmem [#allocation2], %s331
          %s333 = smul.u32 2, %s24
          %s334 = smul.addr %s333, 8
          %s335 = scalar_lea.vmem %s0, %s334
          // Predicated region
          $region45: #{tpu_custom_call.1} parent=43 // pred_check
            _
          $region46: #{tpu_custom_call.1} parent=43 // pred_check_branch
            %337 = sbr.rel (0) target = $region48
          $region47: #{tpu_custom_call.1} parent=43 // pred_region
            // Predicated region
            $region49: #{tpu_custom_call.1} parent=47 // pred_check
              _
            $region50: #{tpu_custom_call.1} parent=47 // pred_check_branch
              %339 = sbr.rel (0) target = $region52
            $region51: #{tpu_custom_call.1} parent=47 // pred_region
              loop: start=0, step=1, limit=1
              $region53: #{tpu_custom_call.1} parent=51 // loop_pre_header
                _
              $region54: #{tpu_custom_call.1} parent=51 // loop_header
                %s341 = sphi 0, %s345
                %p342 = scmp.ge.s32.totalorder %s341, 1
                %s346 = sphi %s335, %s335
                %s347 = sphi %s332, %s332
              $region55: #{tpu_custom_call.1} parent=51 // loop_header_branch
                %344 = sbr.rel (%p342) target = $region59
              $region56: #{tpu_custom_call.1} parent=51 // loop_body
                %v348 = vld [vmem:[%s346] sm:$0xff]
                %349 = vst [vmem:[%s347] sm:$0xff] %v348
                %v350 = vld [vmem:[%s346 + $0x8] sm:$0xff]
                %351 = vst [vmem:[%s347 + $0x8] sm:$0xff] %v350
                %v352 = vld [vmem:[%s346 + $0x20] sm:$0xff]
                %353 = vst [vmem:[%s347 + $0x10] sm:$0xff] %v352
                %v354 = vld [vmem:[%s346 + $0x28] sm:$0xff]
                %355 = vst [vmem:[%s347 + $0x18] sm:$0xff] %v354
              $region57: #{tpu_custom_call.1} parent=51 // loop_footer
                %s345 = sadd.s32 1, %s341
              $region58: #{tpu_custom_call.1} parent=51 // loop_footer_branch
                %340 = sbr.rel target = $region54
              $region59: #{tpu_custom_call.1} parent=51 // loop_exit
                _
            $region52: #{tpu_custom_call.1} parent=47 // pred_fallthru
              _
            // Predicated region
            $region60: #{tpu_custom_call.1} parent=47 // pred_check
              _
            $region61: #{tpu_custom_call.1} parent=47 // pred_check_branch
              %357 = sbr.rel target = $region63
            $region62: #{tpu_custom_call.1} parent=47 // pred_region
              _
            $region63: #{tpu_custom_call.1} parent=47 // pred_fallthru
              _
          $region48: #{tpu_custom_call.1} parent=43 // pred_fallthru
            _
          %358 = vnop
        $region44: #{tpu_custom_call.1} parent=39 // pred_fallthru
          _
        // Predicated region
        $region64: #{tpu_custom_call.1} parent=39 // pred_check
          %p359 = pneg %p196
        $region65: #{tpu_custom_call.1} parent=39 // pred_check_branch
          %361 = sbr.rel (%p359) target = $region67
        $region66: #{tpu_custom_call.1} parent=39 // pred_region
          %s362 = smul.u32 2, %s24
          %p363 = scmp.lt.s32.totalorder %s362, 3
          %s364 = scalar_select %p363, %s362, 3
          %s365 = smul.addr %s364, 8
          %s366 = scalar_lea.vmem %s7, %s365
          %s367 = smul.u32 2, %s24
        $region67: #{tpu_custom_call.1} parent=39 // pred_fallthru
          _
      $region40: #{tpu_custom_call.1} parent=5 // pred_fallthru
        _
      %p368 = scmp.le.s32.totalorder 1, %s24
      %p369 = scmp.lt.s32.totalorder %s24, 3
      %p370 = pnand %p368, %p369
      %p371 = pneg %p370
      // Predicated region
      $region68: #{tpu_custom_call.1} parent=5 // pred_check
        _
      $region69: #{tpu_custom_call.1} parent=5 // pred_check_branch
        %373 = sbr.rel (%p370) target = $region71
      $region70: #{tpu_custom_call.1} parent=5 // pred_region
        %s374 = ssub.s32 %s24, 1
        %s375 = sand.u32 %s37, 1
        %s376 = sand.u32 %s37, 1
        %s377 = smul.addr %s376, 32
        %s378 = scalar_lea.vmem [#allocation2], %s377
        // Predicated region
        $region72: #{tpu_custom_call.1} parent=70 // pred_check
          %p379 = pneg %p50
        $region73: #{tpu_custom_call.1} parent=70 // pred_check_branch
          %381 = sbr.rel (%p379) target = $region75
        $region74: #{tpu_custom_call.1} parent=70 // pred_region
          _
        $region75: #{tpu_custom_call.1} parent=70 // pred_fallthru
          _
        // Predicated region
        $region76: #{tpu_custom_call.1} parent=70 // pred_check
          %p382 = pneg %p155
        $region77: #{tpu_custom_call.1} parent=70 // pred_check_branch
          %384 = sbr.rel (%p382) target = $region79
        $region78: #{tpu_custom_call.1} parent=70 // pred_region
          %386 = dma.done [#allocation4], 128
        $region79: #{tpu_custom_call.1} parent=70 // pred_fallthru
          _
        %s387 = sand.u32 %s37, 1
        %s388 = sand.u32 %s37, 1
        %s389 = smul.addr %s388, 32
        %s390 = scalar_lea.vmem [#allocation2], %s389
        %p391 = pneg %p50
        %p392 = pneg %p47
        %p393 = pneg %p71
        %p394 = pneg %p68
        %p395 = pneg %p92
        %p396 = pneg %p89
        %p397 = pneg %p113
        %p398 = pneg %p110
        %p399 = pneg %p134
        %p400 = pneg %p131
        %p401 = pneg %p155
        %p402 = pneg %p152
        %p403 = pneg %p176
        %p404 = pneg %p173
        %s405 = smul.u32 2, %s29
        %p406 = scmp.lt.s32.totalorder %s405, 3
        %s407 = scalar_select %p406, %s405, 3
        %s408 = smul.addr %s407, 8
        %s409 = scalar_lea.vmem %s7, %s408
        %p410 = pneg %p202
        %p411 = pneg %p199
        %p412 = pneg %p228
        %p413 = pneg %p225
        %s414 = sand.u32 %s215, 1
        %s415 = scalar_lea.sflag [#allocation5], %s414
        %s416 = sand.u32 %s215, 1
        %s417 = smul.addr %s416, 2
        %s418 = scalar_lea.vmem [#allocation6], %s417
        %p419 = pneg %p254
        %p420 = pneg %p251
        %s421 = sand.u32 %s29, 1
        %s422 = scalar_lea.sflag [#allocation8], %s421
        %s423 = sand.u32 %s241, 1
        %s424 = smul.addr %s423, 16
        %s425 = scalar_lea.vmem [#allocation7], %s424
        %p426 = pneg %p280
        %p427 = pneg %p277
        %s428 = sand.u32 %s29, 1
        %s429 = scalar_lea.sflag [#allocation8], %s428
        %s430 = sand.u32 %s267, 1
        %s431 = smul.addr %s430, 16
        %s432 = scalar_lea.vmem [#allocation9], %s431
        %s433 = smul.u32 2, %s29
        %s434 = smul.u32 2, %s29
        %p435 = scmp.lt.s32.totalorder %s434, 3
        %s436 = scalar_select %p435, %s434, 3
        %s437 = smul.addr %s436, 8
        %s438 = scalar_lea.vmem %s7, %s437
        %s439 = smul.u32 2, %s29
        %s440 = smul.u32 2, %s29
        %s441 = smul.u32 2, %s29
        %s442 = smul.u32 2, %s29
        %v443 = vld [vmem:[%s378] sm:$0xff]
        %v444 = vld [vmem:[%s378 + $0x8] sm:$0xff]
        %v445 = vld [vmem:[%s378 + $0x10] sm:$0xff]
        %v446 = vld [vmem:[%s378 + $0x18] sm:$0xff]
        %v447 = vld [vmem:[%s1] sm:$0xff]
        %v448 = vld [vmem:[%s1 + $0x8] sm:$0xff]
        %v449 = vld [vmem:[%s1 + $0x10] sm:$0xff]
        %v450 = vld [vmem:[%s1 + $0x18] sm:$0xff]
        %v451 = vld [vmem:[%s2] sm:$0xff]
        %v452 = vld [vmem:[%s2 + $0x8] sm:$0xff]
        %v453 = vld [vmem:[%s2 + $0x10] sm:$0xff]
        %v454 = vld [vmem:[%s2 + $0x18] sm:$0xff]
        %456 = vset.pattern.permute.xlu0 0
        %457 = vperm.xlu0 %456, %v451
        %v458 = vpop.permute.xlu0 %457
        %461 = vset.pattern.permute.xlu0 0
        %462 = vperm.xlu0 %461, %v452
        %v463 = vpop.permute.xlu0 %462
        %466 = vset.pattern.permute.xlu0 0
        %467 = vperm.xlu0 %466, %v453
        %v468 = vpop.permute.xlu0 %467
        %471 = vset.pattern.permute.xlu0 0
        %472 = vperm.xlu0 %471, %v454
        %v473 = vpop.permute.xlu0 %472
        %vm475 = vcmask 130048
        %v477 = vsel %vm475, %v447, 0
        %v480 = vsel %vm475, %v448, 0
        %v483 = vsel %vm475, %v449, 0
        %v486 = vsel %vm475, %v450, 0
        %488 = vmatpush.msra.mxu0 0.0
        %489 = vmatpush.msra.mxu0 0.0
        %490 = vmatpush.msra.mxu0 0.0
        %491 = vmatpush.msra.mxu0 0.0
        %492 = vmatpush.msra.mxu0 0.0
        %493 = vmatpush.msra.mxu0 0.0
        %494 = vmatpush.msra.mxu0 0.0
        %495 = vmatpush.msra.mxu0 0.0
        %496 = vmatpush.msra.mxu0 0.0
        %497 = vmatpush.msra.mxu0 0.0
        %498 = vmatpush.msra.mxu0 0.0
        %499 = vmatpush.msra.mxu0 0.0
        %500 = vmatpush.msra.mxu0 0.0
        %501 = vmatpush.msra.mxu0 0.0
        %502 = vmatpush.msra.mxu0 %v445
        %503 = vmatpush.msra.mxu0 %v443
        %504 = vmatmul.f32.gmra.mxu0 %v477
        %v505 = vpop.f32.mrf.mxu0
        %v506 = vadd.f32 %v458, %v505
        %507 = vmatmul.f32.gmra.mxu0 %v480
        %v508 = vpop.f32.mrf.mxu0
        %v509 = vadd.f32 %v463, %v508
        %510 = vmatmul.f32.gmra.mxu0 %v483
        %v511 = vpop.f32.mrf.mxu0
        %v512 = vadd.f32 %v468, %v511
        %513 = vmatmul.f32.gmra.mxu0 %v486
        %v514 = vpop.f32.mrf.mxu0
        %v515 = vadd.f32 %v473, %v514
        %516 = vdwg.mxu0
        %517 = vmatpush.msra.mxu0 0.0
        %518 = vmatpush.msra.mxu0 0.0
        %519 = vmatpush.msra.mxu0 0.0
        %520 = vmatpush.msra.mxu0 0.0
        %521 = vmatpush.msra.mxu0 0.0
        %522 = vmatpush.msra.mxu0 0.0
        %523 = vmatpush.msra.mxu0 0.0
        %524 = vmatpush.msra.mxu0 0.0
        %525 = vmatpush.msra.mxu0 0.0
        %526 = vmatpush.msra.mxu0 0.0
        %527 = vmatpush.msra.mxu0 0.0
        %528 = vmatpush.msra.mxu0 0.0
        %529 = vmatpush.msra.mxu0 0.0
        %530 = vmatpush.msra.mxu0 0.0
        %531 = vmatpush.msra.mxu0 %v446
        %532 = vmatpush.msra.mxu0 %v444
        %533 = vmatmul.f32.gmra.mxu0 %v477
        %v534 = vpop.f32.mrf.mxu0
        %v535 = vadd.f32 %v458, %v534
        %536 = vmatmul.f32.gmra.mxu0 %v480
        %v537 = vpop.f32.mrf.mxu0
        %v538 = vadd.f32 %v463, %v537
        %539 = vmatmul.f32.gmra.mxu0 %v483
        %v540 = vpop.f32.mrf.mxu0
        %v541 = vadd.f32 %v468, %v540
        %542 = vmatmul.f32.gmra.mxu0 %v486
        %v543 = vpop.f32.mrf.mxu0
        %v544 = vadd.f32 %v473, %v543
        %545 = vdwg.mxu0
        %v546 = vtanh.pop %v506
        %v547 = vtanh.pop %v535
        %v548 = vtanh.pop %v509
        %v549 = vtanh.pop %v538
        %v550 = vtanh.pop %v512
        %v551 = vtanh.pop %v541
        %v552 = vtanh.pop %v515
        %v553 = vtanh.pop %v544
        %v554 = vld [vmem:[%s3] sm:$0xff]
        %v555 = vld [vmem:[%s3 + $0x8] sm:$0xff]
        %v556 = vld [vmem:[%s3 + $0x10] sm:$0xff]
        %v557 = vld [vmem:[%s3 + $0x18] sm:$0xff]
        %v558 = vld [vmem:[%s4] sm:$0xff]
        %v559 = vld [vmem:[%s4 + $0x8] sm:$0xff]
        %v560 = vld [vmem:[%s4 + $0x10] sm:$0xff]
        %v561 = vld [vmem:[%s4 + $0x18] sm:$0xff]
        %563 = vset.pattern.permute.xlu0 0
        %564 = vperm.xlu0 %563, %v558
        %v565 = vpop.permute.xlu0 %564
        %568 = vset.pattern.permute.xlu0 0
        %569 = vperm.xlu0 %568, %v559
        %v570 = vpop.permute.xlu0 %569
        %573 = vset.pattern.permute.xlu0 0
        %574 = vperm.xlu0 %573, %v560
        %v575 = vpop.permute.xlu0 %574
        %578 = vset.pattern.permute.xlu0 0
        %579 = vperm.xlu0 %578, %v561
        %v580 = vpop.permute.xlu0 %579
        %vm582 = vcmask 261120
        %v584 = vsel %vm582, %v554, 0
        %v587 = vsel %vm582, %v555, 0
        %v590 = vsel %vm582, %v556, 0
        %v593 = vsel %vm582, %v557, 0
        %595 = vmatpush.msra.mxu0 0.0
        %596 = vmatpush.msra.mxu0 0.0
        %597 = vmatpush.msra.mxu0 0.0
        %598 = vmatpush.msra.mxu0 0.0
        %599 = vmatpush.msra.mxu0 0.0
        %600 = vmatpush.msra.mxu0 0.0
        %601 = vmatpush.msra.mxu0 0.0
        %602 = vmatpush.msra.mxu0 0.0
        %603 = vmatpush.msra.mxu0 0.0
        %604 = vmatpush.msra.mxu0 0.0
        %605 = vmatpush.msra.mxu0 0.0
        %606 = vmatpush.msra.mxu0 0.0
        %607 = vmatpush.msra.mxu0 %v552
        %608 = vmatpush.msra.mxu0 %v550
        %609 = vmatpush.msra.mxu0 %v548
        %610 = vmatpush.msra.mxu0 %v546
        %611 = vmatmul.f32.gmra.mxu0 %v584
        %v612 = vpop.f32.mrf.mxu0
        %v613 = vadd.f32 %v565, %v612
        %614 = vmatmul.f32.gmra.mxu0 %v587
        %v615 = vpop.f32.mrf.mxu0
        %v616 = vadd.f32 %v570, %v615
        %617 = vmatmul.f32.gmra.mxu0 %v590
        %v618 = vpop.f32.mrf.mxu0
        %v619 = vadd.f32 %v575, %v618
        %620 = vmatmul.f32.gmra.mxu0 %v593
        %v621 = vpop.f32.mrf.mxu0
        %v622 = vadd.f32 %v580, %v621
        %623 = vdwg.mxu0
        %624 = vmatpush.msra.mxu0 0.0
        %625 = vmatpush.msra.mxu0 0.0
        %626 = vmatpush.msra.mxu0 0.0
        %627 = vmatpush.msra.mxu0 0.0
        %628 = vmatpush.msra.mxu0 0.0
        %629 = vmatpush.msra.mxu0 0.0
        %630 = vmatpush.msra.mxu0 0.0
        %631 = vmatpush.msra.mxu0 0.0
        %632 = vmatpush.msra.mxu0 0.0
        %633 = vmatpush.msra.mxu0 0.0
        %634 = vmatpush.msra.mxu0 0.0
        %635 = vmatpush.msra.mxu0 0.0
        %636 = vmatpush.msra.mxu0 %v553
        %637 = vmatpush.msra.mxu0 %v551
        %638 = vmatpush.msra.mxu0 %v549
        %639 = vmatpush.msra.mxu0 %v547
        %640 = vmatmul.f32.gmra.mxu0 %v584
        %v641 = vpop.f32.mrf.mxu0
        %v642 = vadd.f32 %v565, %v641
        %643 = vmatmul.f32.gmra.mxu0 %v587
        %v644 = vpop.f32.mrf.mxu0
        %v645 = vadd.f32 %v570, %v644
        %646 = vmatmul.f32.gmra.mxu0 %v590
        %v647 = vpop.f32.mrf.mxu0
        %v648 = vadd.f32 %v575, %v647
        %649 = vmatmul.f32.gmra.mxu0 %v593
        %v650 = vpop.f32.mrf.mxu0
        %v651 = vadd.f32 %v580, %v650
        %652 = vdwg.mxu0
        %v653 = vtanh.pop %v613
        %v654 = vtanh.pop %v642
        %v655 = vtanh.pop %v616
        %v656 = vtanh.pop %v645
        %v657 = vtanh.pop %v619
        %v658 = vtanh.pop %v648
        %v659 = vtanh.pop %v622
        %v660 = vtanh.pop %v651
        %v661 = vld [vmem:[#allocation3] sm:$0xff]
        %v662 = vld [vmem:[%s6] sm:$0xff]
        %664 = vset.pattern.permute.xlu0 0
        %665 = vperm.xlu0 %664, %v662
        %v666 = vpop.permute.xlu0 %665
        %v669 = vsel %vm582, %v661, 0
        %671 = vmatpush.msra.mxu0 0.0
        %672 = vmatpush.msra.mxu0 0.0
        %673 = vmatpush.msra.mxu0 0.0
        %674 = vmatpush.msra.mxu0 0.0
        %675 = vmatpush.msra.mxu0 0.0
        %676 = vmatpush.msra.mxu0 0.0
        %677 = vmatpush.msra.mxu0 0.0
        %678 = vmatpush.msra.mxu0 0.0
        %679 = vmatpush.msra.mxu0 0.0
        %680 = vmatpush.msra.mxu0 0.0
        %681 = vmatpush.msra.mxu0 0.0
        %682 = vmatpush.msra.mxu0 0.0
        %683 = vmatpush.msra.mxu0 %v659
        %684 = vmatpush.msra.mxu0 %v657
        %685 = vmatpush.msra.mxu0 %v655
        %686 = vmatpush.msra.mxu0 %v653
        %687 = vmatmul.f32.gmra.mxu0 %v669
        %v688 = vpop.f32.mrf.mxu0
        %v689 = vadd.f32 %v666, %v688
        %690 = vdwg.mxu0
        %691 = vmatpush.msra.mxu0 0.0
        %692 = vmatpush.msra.mxu0 0.0
        %693 = vmatpush.msra.mxu0 0.0
        %694 = vmatpush.msra.mxu0 0.0
        %695 = vmatpush.msra.mxu0 0.0
        %696 = vmatpush.msra.mxu0 0.0
        %697 = vmatpush.msra.mxu0 0.0
        %698 = vmatpush.msra.mxu0 0.0
        %699 = vmatpush.msra.mxu0 0.0
        %700 = vmatpush.msra.mxu0 0.0
        %701 = vmatpush.msra.mxu0 0.0
        %702 = vmatpush.msra.mxu0 0.0
        %703 = vmatpush.msra.mxu0 %v660
        %704 = vmatpush.msra.mxu0 %v658
        %705 = vmatpush.msra.mxu0 %v656
        %706 = vmatpush.msra.mxu0 %v654
        %707 = vmatmul.f32.gmra.mxu0 %v669
        %v708 = vpop.f32.mrf.mxu0
        %v709 = vadd.f32 %v666, %v708
        %710 = vdwg.mxu0
        %v711 = vrot.slane %v689, 4
        %v712 = vmax.f32 %v689, %v711
        %v713 = vrot.slane %v712, 2
        %v714 = vmax.f32 %v712, %v713
        %v715 = vrot.slane %v714, 1
        %v716 = vmax.f32 %v714, %v715
        %v717 = vrot.slane %v709, 4
        %v718 = vmax.f32 %v709, %v717
        %v719 = vrot.slane %v718, 2
        %v720 = vmax.f32 %v718, %v719
        %v721 = vrot.slane %v720, 1
        %v722 = vmax.f32 %v720, %v721
        %v723 = vsub.f32 %v689, %v716
        %v724 = vsub.f32 %v709, %v722
        %v725 = vmul.f32 %v723, 1.442695
        %v726 = vpow.pop %v725
        %v727 = vmul.f32 %v724, 1.442695
        %v728 = vpow.pop %v727
        %v729 = vrot.slane %v726, 4
        %v730 = vadd.f32 %v726, %v729
        %v731 = vrot.slane %v730, 2
        %v732 = vadd.f32 %v730, %v731
        %v733 = vrot.slane %v732, 1
        %v734 = vadd.f32 %v732, %v733
        %v735 = vrot.slane %v728, 4
        %v736 = vadd.f32 %v728, %v735
        %v737 = vrot.slane %v736, 2
        %v738 = vadd.f32 %v736, %v737
        %v739 = vrot.slane %v738, 1
        %v740 = vadd.f32 %v738, %v739
        %v741 = vlog2.pop %v734
        %v742 = vmul.f32 %v741, 0.6931472
        %v743 = vlog2.pop %v740
        %v744 = vmul.f32 %v743, 0.6931472
        %v745 = vsub.f32 %v723, %v742
        %v746 = vsub.f32 %v724, %v744
        %v747 = vmul.f32 %v745, 1.442695
        %v748 = vpow.pop %v747
        %v749 = vmul.f32 %v746, 1.442695
        %v750 = vpow.pop %v749
        %vm751 = vcmp.eq.f32.partialorder %v748, 0.0
        %vm752 = vcmp.eq.f32.partialorder %v750, 0.0
        %v753 = vsel %vm751, -18.420681, %v745
        %v754 = vsel %vm752, -18.420681, %v746
        %v755 = vld [vmem:[%s438] sm:$0xff]
        %v756 = vld [vmem:[%s438 + $0x8] sm:$0xff]
        %v757 = vadd.f32 %v745, %v755
        %v758 = vadd.f32 %v746, %v756
        %v759 = vrot.slane %v757, 4
        %v760 = vmax.f32 %v757, %v759
        %v761 = vrot.slane %v760, 2
        %v762 = vmax.f32 %v760, %v761
        %v763 = vrot.slane %v762, 1
        %v764 = vmax.f32 %v762, %v763
        %v765 = vrot.slane %v758, 4
        %v766 = vmax.f32 %v758, %v765
        %v767 = vrot.slane %v766, 2
        %v768 = vmax.f32 %v766, %v767
        %v769 = vrot.slane %v768, 1
        %v770 = vmax.f32 %v768, %v769
        %v771 = vlaneseq
        %v772 = vshrl.u32 %v771, 7
        %vm773 = vcmp.eq.f32.partialorder %v757, %v764
        %vm774 = vcmp.eq.f32.partialorder %v758, %v770
        %v775 = vsel %vm773, %v772, 8
        %v776 = vsel %vm774, %v772, 8
        %v777 = vrot.slane %v775, 4
        %vm778 = vcmp.lt.s32.totalorder %v775, %v777
        %v779 = vsel %vm778, %v775, %v777
        %v780 = vrot.slane %v779, 2
        %vm781 = vcmp.lt.s32.totalorder %v779, %v780
        %v782 = vsel %vm781, %v779, %v780
        %v783 = vrot.slane %v782, 1
        %vm784 = vcmp.lt.s32.totalorder %v782, %v783
        %v785 = vsel %vm784, %v782, %v783
        %v786 = vrot.slane %v776, 4
        %vm787 = vcmp.lt.s32.totalorder %v776, %v786
        %v788 = vsel %vm787, %v776, %v786
        %v789 = vrot.slane %v788, 2
        %vm790 = vcmp.lt.s32.totalorder %v788, %v789
        %v791 = vsel %vm790, %v788, %v789
        %v792 = vrot.slane %v791, 1
        %vm793 = vcmp.lt.s32.totalorder %v791, %v792
        %v794 = vsel %vm793, %v791, %v792
        %v795 = vrot.slane %v794, 7
        %vm796 = vcmask 1040384
        %v797 = vsel %vm796, %v785, %v795
        %v798 = vlaneseq
        %vm799 = vcmp.ge.s32.totalorder %v798, 0
        %vm800 = vcmp.lt.s32.totalorder %v798, 256
        %vm801 = vmand %vm799, %vm800
        %802 = vst.msk [vmem:[%s418] sm:$0x3] %vm801, %v797
        %803 = vst [vmem:[%s425] sm:$0xff] %v753
        %804 = vst [vmem:[%s425 + $0x8] sm:$0xff] %v754
        %805 = vst [vmem:[%s432] sm:$0xff] %v748
        %806 = vst [vmem:[%s432 + $0x8] sm:$0xff] %v750
        %s807 = sand.u32 %s215, 1
        %s808 = scalar_lea.sflag [#allocation5], %s807
        %s809 = sand.u32 %s215, 1
        %s810 = smul.addr %s809, 2
        %s811 = scalar_lea.vmem [#allocation6], %s810
        %s812 = sand.u32 %s29, 1
        %s813 = scalar_lea.sflag [#allocation8], %s812
        %s814 = sand.u32 %s241, 1
        %s815 = smul.addr %s814, 16
        %s816 = scalar_lea.vmem [#allocation7], %s815
        %s817 = sand.u32 %s29, 1
        %s818 = scalar_lea.sflag [#allocation8], %s817
        %s819 = sand.u32 %s267, 1
        %s820 = smul.addr %s819, 16
        %s821 = scalar_lea.vmem [#allocation9], %s820
        // Predicated region
        $region80: #{tpu_custom_call.1} parent=70 // pred_check
          %p822 = pneg %p225
        $region81: #{tpu_custom_call.1} parent=70 // pred_check_branch
          %824 = sbr.rel (%p822) target = $region83
        $region82: #{tpu_custom_call.1} parent=70 // pred_region
          %s825 = smul.u32 2, %s29
          %827 = vsyncadd %s808, 0
          %s828 = scalar_lea.hbm %s8, %s825
          %s830 = sshll.u32 %s811, 4
          %s831 = int_to_ptr.vmem [resolvable:$true] %s830
          %s832 = sshll.u32 %s828, 4
          %s833 = int_to_ptr.hbm [resolvable:$true] %s832
          %835 = dma.vmem_to_hbm [thread:$0]  %s831, 32, %s833, %s808
        $region83: #{tpu_custom_call.1} parent=70 // pred_fallthru
          _
        // Predicated region
        $region84: #{tpu_custom_call.1} parent=70 // pred_check
          %p836 = pneg %p251
        $region85: #{tpu_custom_call.1} parent=70 // pred_check_branch
          %838 = sbr.rel (%p836) target = $region87
        $region86: #{tpu_custom_call.1} parent=70 // pred_region
          %s839 = smul.u32 2, %s29
          %841 = vsyncadd %s813, 0
          %s842 = smul.addr %s839, 8
          %s843 = scalar_lea.hbm %s9, %s842
          %s845 = sshll.u32 %s816, 4
          %s846 = int_to_ptr.vmem [resolvable:$true] %s845
          %s847 = sshll.u32 %s843, 4
          %s848 = int_to_ptr.hbm [resolvable:$true] %s847
          %850 = dma.vmem_to_hbm [thread:$0]  %s846, 256, %s848, %s813
        $region87: #{tpu_custom_call.1} parent=70 // pred_fallthru
          _
        // Predicated region
        $region88: #{tpu_custom_call.1} parent=70 // pred_check
          %p851 = pneg %p277
        $region89: #{tpu_custom_call.1} parent=70 // pred_check_branch
          %853 = sbr.rel (%p851) target = $region91
        $region90: #{tpu_custom_call.1} parent=70 // pred_region
          %s854 = smul.u32 2, %s29
          %856 = vsyncadd %s818, 0
          %s857 = smul.addr %s854, 8
          %s858 = scalar_lea.hbm %s10, %s857
          %s860 = sshll.u32 %s821, 4
          %s861 = int_to_ptr.vmem [resolvable:$true] %s860
          %s862 = sshll.u32 %s858, 4
          %s863 = int_to_ptr.hbm [resolvable:$true] %s862
          %865 = dma.vmem_to_hbm [thread:$0]  %s861, 256, %s863, %s818
        $region91: #{tpu_custom_call.1} parent=70 // pred_fallthru
          _
      $region71: #{tpu_custom_call.1} parent=5 // pred_fallthru
        _
      %p866 = scmp.le.s32.totalorder 2, %s24
      // Predicated region
      $region92: #{tpu_custom_call.1} parent=5 // pred_check
        %p867 = pneg %p866
      $region93: #{tpu_custom_call.1} parent=5 // pred_check_branch
        %869 = sbr.rel (%p867) target = $region95
      $region94: #{tpu_custom_call.1} parent=5 // pred_region
        %s870 = ssub.s32 %s24, 2
        // Predicated region
        $region96: #{tpu_custom_call.1} parent=94 // pred_check
          %p871 = pneg %p231
        $region97: #{tpu_custom_call.1} parent=94 // pred_check_branch
          %873 = sbr.rel (%p871) target = $region99
        $region98: #{tpu_custom_call.1} parent=94 // pred_region
          %s874 = sand.u32 %s216, 1
          %s875 = scalar_lea.sflag [#allocation5], %s874
          %s876 = sand.u32 %s216, 1
          %s877 = smul.addr %s876, 2
          %s878 = scalar_lea.vmem [#allocation6], %s877
          %880 = dma.done %s875, 32
        $region99: #{tpu_custom_call.1} parent=94 // pred_fallthru
          _
        // Predicated region
        $region100: #{tpu_custom_call.1} parent=94 // pred_check
          %p881 = pneg %p257
        $region101: #{tpu_custom_call.1} parent=94 // pred_check_branch
          %883 = sbr.rel (%p881) target = $region103
        $region102: #{tpu_custom_call.1} parent=94 // pred_region
          %s884 = sand.u32 %s30, 1
          %s885 = scalar_lea.sflag [#allocation8], %s884
          %s886 = sand.u32 %s242, 1
          %s887 = smul.addr %s886, 16
          %s888 = scalar_lea.vmem [#allocation7], %s887
          %890 = dma.done %s885, 256
        $region103: #{tpu_custom_call.1} parent=94 // pred_fallthru
          _
        // Predicated region
        $region104: #{tpu_custom_call.1} parent=94 // pred_check
          %p891 = pneg %p283
        $region105: #{tpu_custom_call.1} parent=94 // pred_check_branch
          %893 = sbr.rel (%p891) target = $region107
        $region106: #{tpu_custom_call.1} parent=94 // pred_region
          %s894 = sand.u32 %s30, 1
          %s895 = scalar_lea.sflag [#allocation8], %s894
          %s896 = sand.u32 %s268, 1
          %s897 = smul.addr %s896, 16
          %s898 = scalar_lea.vmem [#allocation9], %s897
          %900 = dma.done %s895, 256
        $region107: #{tpu_custom_call.1} parent=94 // pred_fallthru
          _
      $region95: #{tpu_custom_call.1} parent=5 // pred_fallthru
        _
    $region6: #{tpu_custom_call.1} parent=1 // loop_footer
      %s28 = sadd.s32 1, %s24
    $region7: #{tpu_custom_call.1} parent=1 // loop_footer_branch
      %23 = sbr.rel target = $region3
    $region8: #{tpu_custom_call.1} parent=1 // loop_exit
      _
    %901 = vsyncpa [#allocation4], 1
    %s902 = scalar_lea.sflag [#allocation4], 1
    %903 = vsyncpa %s902, 1
    %904 = vsyncpa [#allocation5], 1
    %s905 = scalar_lea.sflag [#allocation5], 1
    %906 = vsyncpa %s905, 1
    %907 = vsyncpa [#allocation8], 1
    %s908 = scalar_lea.sflag [#allocation8], 1
    %909 = vsyncpa %s908, 1

</llo_original>
